<compile_context>
chip_gen: v7x
topology: tpu7x:2x2x1
jax: 0.10.0
libtpu: 0.0.40
codegen_flags: <defaults>
</compile_context>

<pallas_src>
import functools
import math

import jax
import jax.numpy as jnp
from jax.experimental import pallas as pl
from jax.experimental.pallas import tpu as pltpu

_LANES = 128
_SUBLANES = 8


def _round_up(x, m):
    return ((x + m - 1) // m) * m


def _pick_feature_tile(dim_p, max_tile=512):
    """Largest multiple-of-128 divisor of dim_p that is <= max_tile (dim_p is a multiple of 128)."""
    best = _LANES
    t = _LANES
    while t <= min(dim_p, max_tile):
        if dim_p % t == 0:
            best = t
        t += _LANES
    return best


# ----------------------------- Pallas kernel (hot path) -----------------------------
def _timestep_embed_mlp_kernel(t_ref, sincos_ref, w1_ref, b1_ref, w2_ref, b2_ref, o_ref, h_ref):
    """out[i, j-tile] = swish(sin(t*freq + phase) @ W1 + b1) @ W2[:, j-tile] + b2[j-tile].

    Grid = (batch tiles, output-feature tiles).  Linear-1 + swish are computed once per batch tile
    (j == 0) and cached in the bf16 scratch h_ref; every N step does one MXU tile of Linear-2.
    """
    j = pl.program_id(1)

    @pl.when(j == 0)
    def _():
        # Fused sinusoidal embedding: temb[b, e] = sin(t[b]*freq[e] + phase[e]);
        # cos(x) = sin(x + pi/2) on the "cos" half.  Padded lanes have freq = phase = 0 -> sin(0) = 0,
        # matching the zero-padded W1 rows.  sin runs on the EUP slot.
        t = t_ref[...]                                   # (tB, 1)   f32
        freqs = sincos_ref[0:1, :]                       # (1, Ep)   f32
        phase = sincos_ref[1:2, :]                       # (1, Ep)   f32
        temb = jnp.sin(t * freqs + phase)                # (tB, Ep)  f32

        # Linear 1: bf16 operands on the MXU, f32 accumulation; bias + swish in f32 (v5e-safe).
        h = jnp.dot(temb.astype(w1_ref.dtype), w1_ref[...],
                    preferred_element_type=jnp.float32) + b1_ref[...]
        # Swish with one EUP transcendental: sigmoid(h) = 0.5*(tanh(h/2)+1); mul/add go to the VALU.
        sig = 0.5 * (jnp.tanh(0.5 * h) + 1.0)
        h_ref[...] = (h * sig).astype(h_ref.dtype)       # cache bf16 activations for all N steps

    # Linear 2, one output-feature tile: bf16 operands, f32 accumulation.
    o = jnp.dot(h_ref[...], w2_ref[...], preferred_element_type=jnp.float32) + b2_ref[...]
    o_ref[...] = o.astype(o_ref.dtype)


@functools.partial(jax.jit, static_argnames=("out_dim", "out_dtype"))
def _timestep_embedding_forward(timesteps, sincos, w1, b1, w2, b2, *, out_dim,
                                out_dtype=jnp.float32):
    """timesteps: (B,); sincos: (2, Ep); w1: (Ep, Hp) bf16; b1: (1, Hp); w2: (Hp, Op) bf16; b2: (1, Op)."""
    B = timesteps.shape[0]
    Ep = sincos.shape[1]
    Hp = w1.shape[1]
    Op = w2.shape[1]

    # Batch tiling: pad B to a sublane multiple; batch axis is "parallel" (megacore on v7x when B grows).
    Bp0 = _round_up(B, _SUBLANES)
    tB = min(Bp0, 256)
    Bp = _round_up(Bp0, tB)
    t_col = timesteps.astype(jnp.float32).reshape(B, 1)
    if Bp != B:
        t_col = jnp.pad(t_col, ((0, Bp - B), (0, 0)))

    # Output-feature tiling: gives the pipeline >=2 steps and bounds the per-step W2 VMEM tile.
    tN = _pick_feature_tile(Op)

    const = dict(pipeline_mode=pl.Buffered(1))  # grid-invariant blocks: no second buffer

    out = pl.pallas_call(
        _timestep_embed_mlp_kernel,
        out_shape=jax.ShapeDtypeStruct((Bp, Op), out_dtype),
        grid=(Bp // tB, Op // tN),
        in_specs=[
            pl.BlockSpec((tB, 1), lambda i, j: (i, 0)),          # timesteps column
            pl.BlockSpec((2, Ep), lambda i, j: (0, 0), **const),  # packed freqs/phase table
            pl.BlockSpec((Ep, Hp), lambda i, j: (0, 0), **const),  # W1 (padded, bf16)
            pl.BlockSpec((1, Hp), lambda i, j: (0, 0), **const),   # b1 (padded, f32)
            pl.BlockSpec((Hp, tN), lambda i, j: (0, j)),          # W2 tile (double-buffered -> overlap)
            pl.BlockSpec((1, tN), lambda i, j: (0, j)),           # b2 tile
        ],
        out_specs=pl.BlockSpec((tB, tN), lambda i, j: (i, j)),
        scratch_shapes=[pltpu.VMEM((tB, Hp), jnp.bfloat16)],      # cached Linear-1/swish activations
        compiler_params=pltpu.CompilerParams(
            dimension_semantics=("parallel", "arbitrary"),
        ),
    )(t_col, sincos, w1, b1, w2, b2)

    # Slice only what padding actually added (no-op slices are skipped).
    if Bp != B:
        out = out[:B]
    if Op != out_dim:
        out = out[:, :out_dim]
    return out


# ----------------------------- Module (params, padding, tables) -----------------------------
def _dense_init(key, fan_in, fan_out, gain=1.0):
    # Matches the reference `dense` init: kaiming_uniform_ with the (modified) 'fan_avg' mode,
    # which for nn.Linear resolves to fan_out = out_features; bound = sqrt(3*gain / max(1, fan_out)).
    bound = math.sqrt(3.0 * gain / max(1.0, float(fan_out)))
    # Stored (in, out) so the kernel computes x @ W directly (PyTorch stores (out, in)).
    return jax.random.uniform(key, (fan_in, fan_out), jnp.float32, -bound, bound)


class TimestepEmbeddingPallas:
    def __init__(self, key, embedding_dim, hidden_dim, output_dim, pos_dim=1,
                 scale=10000.0, param_dtype=jnp.bfloat16, out_dtype=jnp.float32):
        # TODO(synk): only pos_dim == 1 (1-D timesteps) is implemented; pos_dim > 1 needs a
        # (B, pos_dim) -> (B, pos_dim*embedding_dim) fused-embedding layout.
        assert pos_dim == 1
        self.embedding_dim = embedding_dim
        self.hidden_dim = hidden_dim
        self.output_dim = output_dim
        self.pos_dim = pos_dim
        self.scale = scale
        self.out_dtype = out_dtype

        in_dim = embedding_dim * pos_dim
        Ep = _round_up(in_dim, _LANES)
        Hp = _round_up(hidden_dim, _LANES)
        Op = _round_up(output_dim, _LANES)

        k1, k2 = jax.random.split(key)
        w1 = _dense_init(k1, in_dim, hidden_dim)       # (in, out) f32
        w2 = _dense_init(k2, hidden_dim, output_dim)   # (in, out) f32
        # Unpadded f32 copies kept only for the pure-JAX reference check.
        self.w1_f32, self.w2_f32 = w1, w2
        self.b1_f32 = jnp.zeros((1, hidden_dim), jnp.float32)
        self.b2_f32 = jnp.zeros((1, output_dim), jnp.float32)

        # Lane-dense, zero-padded kernel parameters (bf16 matmul operands, f32 biases).
        self.w1 = jnp.zeros((Ep, Hp), jnp.float32).at[:in_dim, :hidden_dim].set(w1).astype(param_dtype)
        self.w2 = jnp.zeros((Hp, Op), jnp.float32).at[:hidden_dim, :output_dim].set(w2).astype(param_dtype)
        self.b1 = jnp.zeros((1, Hp), jnp.float32)
        self.b2 = jnp.zeros((1, Op), jnp.float32)

        # Packed sinusoidal table (one DMA): row 0 = freqs, row 1 = phase (pi/2 on the cos half,
        # since cos(x) = sin(x + pi/2)); padded lanes stay 0.
        half = embedding_dim // 2
        emb = math.log(scale) / max(half - 1, 1)   # guard embedding_dim == 2 edge case
        inv_freq = jnp.exp(jnp.arange(half, dtype=jnp.float32) * -emb)
        freqs = (jnp.zeros((Ep,), jnp.float32)
                 .at[:half].set(inv_freq)
                 .at[half:2 * half].set(inv_freq))
        phase = jnp.zeros((Ep,), jnp.float32).at[half:2 * half].set(math.pi / 2.0)
        self.sincos = jnp.stack([freqs, phase], axis=0)   # (2, Ep)

    def __call__(self, timesteps):
        return _timestep_embedding_forward(
            timesteps, self.sincos, self.w1, self.b1, self.w2, self.b2,
            out_dim=self.output_dim, out_dtype=self.out_dtype)


# ----------------------------- Pure-JAX references -----------------------------
def sinusoidal_positional_embedding(timesteps, embedding_dim, scale=10000.0):
    """Exact get_sinusoidal_positional_embedding for 1-D timesteps (pos_dim=1), f32."""
    t = timesteps.astype(jnp.float32)
    half = embedding_dim // 2
    emb = math.log(scale) / (half - 1)
    freqs = jnp.exp(jnp.arange(half, dtype=jnp.float32) * -emb)
    arg = t[:, None] * freqs[None, :]
    emb = jnp.concatenate([jnp.sin(arg), jnp.cos(arg)], axis=-1)
    if embedding_dim % 2 == 1:
        emb = jnp.pad(emb, ((0, 0), (0, 1)))
    return emb


def _reference_mixed(module, timesteps):
    """Pure-JAX reference using the kernel's exact recipe (padded bf16 weights, f32 accum, bf16 acts)."""
    t = timesteps.astype(jnp.float32)[:, None]
    freqs = module.sincos[0:1, :]
    phase = module.sincos[1:2, :]
    temb = jnp.sin(t * freqs + phase)
    h = jnp.dot(temb.astype(module.w1.dtype), module.w1,
                preferred_element_type=jnp.float32) + module.b1
    h = h * jax.nn.sigmoid(h)
    o = jnp.dot(h.astype(module.w2.dtype), module.w2,
                preferred_element_type=jnp.float32) + module.b2
    return o[:, :module.output_dim]


def _reference_f32(module, timesteps):
    """Exact PyTorch-semantics reference in f32 (sin/cos concat, f32 weights, exact sigmoid)."""
    temb = sinusoidal_positional_embedding(timesteps, module.embedding_dim, module.scale)
    h = temb @ module.w1_f32 + module.b1_f32
    h = h * jax.nn.sigmoid(h)
    return h @ module.w2_f32 + module.b2_f32


if __name__ == "__main__":
    key = jax.random.PRNGKey(0)
    k_param, k_t = jax.random.split(key)

    B = 8
    embedding_dim = 32
    hidden_dim = 64
    output_dim = 32

    module = TimestepEmbeddingPallas(k_param, embedding_dim, hidden_dim, output_dim, pos_dim=1)
    timesteps = jax.random.uniform(k_t, (B,), jnp.float32, 0.0, 1000.0)

    out = jax.block_until_ready(module(timesteps))
    assert out.shape == (B, output_dim)
    assert out.dtype == jnp.float32

    # Tight check vs. a pure-JAX reference that uses the same mixed-precision recipe as the kernel.
    ref_mixed = _reference_mixed(module, timesteps)
    assert jnp.allclose(out, ref_mixed, atol=2e-2, rtol=2e-2), "mismatch vs mixed-precision reference"

    # Semantics check vs. the exact f32 PyTorch-equivalent reference (bf16 weights add ~1e-2 slack).
    ref_f32 = _reference_f32(module, timesteps)
    assert jnp.allclose(out, ref_f32, atol=5e-2, rtol=5e-2), "mismatch vs f32 reference"

    print("KERNEL_OK")
</pallas_src>

<mosaic_0001>
module attributes {stable_mosaic.version = 11 : i64} {
  func.func @_timestep_embed_mlp_kernel(%arg0: i32, %arg1: i32, %arg2: memref<8x1xf32, #tpu.memory_space<vmem>>, %arg3: memref<2x128xf32, #tpu.memory_space<vmem>>, %arg4: memref<128x128xbf16, #tpu.memory_space<vmem>>, %arg5: memref<1x128xf32, #tpu.memory_space<vmem>>, %arg6: memref<128x128xbf16, #tpu.memory_space<vmem>>, %arg7: memref<1x128xf32, #tpu.memory_space<vmem>>, %arg8: memref<8x128xf32, #tpu.memory_space<vmem>>, %arg9: memref<8x128xbf16, #tpu.memory_space<vmem>>) attributes {dimension_semantics = [#tpu.dimension_semantics<parallel>, #tpu.dimension_semantics<arbitrary>], iteration_bounds = array<i64: 1, 1>, scalar_prefetch = 0 : i64, scratch_operands = 1 : i64, tpu.core_type = #tpu.core_type<tc>, window_params = [{transform_indices = @transform_0, window_bounds = array<i64: 8, 1>}, {pipeline_mode = #tpu.pipeline_mode<synchronous>, transform_indices = @transform_1, window_bounds = array<i64: 2, 128>}, {pipeline_mode = #tpu.pipeline_mode<synchronous>, transform_indices = @transform_2, window_bounds = array<i64: 128, 128>}, {pipeline_mode = #tpu.pipeline_mode<synchronous>, transform_indices = @transform_3, window_bounds = array<i64: 1, 128>}, {transform_indices = @transform_4, window_bounds = array<i64: 128, 128>}, {transform_indices = @transform_5, window_bounds = array<i64: 1, 128>}, {transform_indices = @transform_6, window_bounds = array<i64: 8, 128>}]} {
    %c0_i32 = arith.constant 0 : i32
    %0 = arith.cmpi eq, %arg1, %c0_i32 : i32
    %1 = arith.extui %0 : i1 to i32
    %c0_i32_0 = arith.constant 0 : i32
    %2 = arith.cmpi ne, %1, %c0_i32_0 : i32
    scf.if %2 {
      %c0_8 = arith.constant 0 : index
      %c0_9 = arith.constant 0 : index
      %10 = vector.load %arg2[%c0_8, %c0_9] : memref<8x1xf32, #tpu.memory_space<vmem>>, vector<8x1xf32>
      %c0_10 = arith.constant 0 : index
      %c0_11 = arith.constant 0 : index
      %11 = vector.load %arg3[%c0_10, %c0_11] : memref<2x128xf32, #tpu.memory_space<vmem>>, vector<1x128xf32>
      %c1 = arith.constant 1 : index
      %c0_12 = arith.constant 0 : index
      %12 = vector.load %arg3[%c1, %c0_12] : memref<2x128xf32, #tpu.memory_space<vmem>>, vector<1x128xf32>
      %13 = vector.broadcast %10 : vector<8x1xf32> to vector<8x128xf32>
      %14 = vector.broadcast %11 : vector<1x128xf32> to vector<8x128xf32>
      %15 = arith.mulf %13, %14 : vector<8x128xf32>
      %16 = vector.broadcast %12 : vector<1x128xf32> to vector<8x128xf32>
      %17 = arith.addf %15, %16 : vector<8x128xf32>
      %18 = math.sin %17 : vector<8x128xf32>
      %19 = arith.truncf %18 : vector<8x128xf32> to vector<8x128xbf16>
      %c0_13 = arith.constant 0 : index
      %c0_14 = arith.constant 0 : index
      %20 = vector.load %arg4[%c0_13, %c0_14] : memref<128x128xbf16, #tpu.memory_space<vmem>>, vector<128x128xbf16>
      %cst_15 = arith.constant dense<0.000000e+00> : vector<8x128xf32>
      %21 = tpu.matmul %19, %20, %cst_15 {dimension_numbers = #tpu.dot_dimension_numbers<[1], [0], [0], [1], [0, 0, 1, 1], [], []>} : vector<8x128xbf16>, vector<128x128xbf16>, vector<8x128xf32> -> vector<8x128xf32>
      %c0_16 = arith.constant 0 : index
      %c0_17 = arith.constant 0 : index
      %22 = vector.load %arg5[%c0_16, %c0_17] : memref<1x128xf32, #tpu.memory_space<vmem>>, vector<1x128xf32>
      %23 = vector.broadcast %22 : vector<1x128xf32> to vector<8x128xf32>
      %24 = arith.addf %21, %23 : vector<8x128xf32>
      %cst_18 = arith.constant 5.000000e-01 : f32
      %25 = vector.broadcast %cst_18 : f32 to vector<8x128xf32>
      %26 = arith.mulf %25, %24 : vector<8x128xf32>
      %27 = math.tanh %26 : vector<8x128xf32>
      %cst_19 = arith.constant 1.000000e+00 : f32
      %28 = vector.broadcast %cst_19 : f32 to vector<8x128xf32>
      %29 = arith.addf %27, %28 : vector<8x128xf32>
      %cst_20 = arith.constant 5.000000e-01 : f32
      %30 = vector.broadcast %cst_20 : f32 to vector<8x128xf32>
      %31 = arith.mulf %30, %29 : vector<8x128xf32>
      %32 = arith.mulf %24, %31 : vector<8x128xf32>
      %33 = arith.truncf %32 : vector<8x128xf32> to vector<8x128xbf16>
      %c0_21 = arith.constant 0 : index
      %c0_22 = arith.constant 0 : index
      %34 = vector.load %arg9[%c0_21, %c0_22] : memref<8x128xbf16, #tpu.memory_space<vmem>>, vector<8x128xbf16>
      tpu.vector_store %arg9[%c0_21, %c0_22], %33 {strides = array<i32>} : memref<8x128xbf16, #tpu.memory_space<vmem>>, vector<8x128xbf16>,
    } else {
    }
    %c0 = arith.constant 0 : index
    %c0_1 = arith.constant 0 : index
    %3 = vector.load %arg9[%c0, %c0_1] : memref<8x128xbf16, #tpu.memory_space<vmem>>, vector<8x128xbf16>
    %c0_2 = arith.constant 0 : index
    %c0_3 = arith.constant 0 : index
    %4 = vector.load %arg6[%c0_2, %c0_3] : memref<128x128xbf16, #tpu.memory_space<vmem>>, vector<128x128xbf16>
    %cst = arith.constant dense<0.000000e+00> : vector<8x128xf32>
    %5 = tpu.matmul %3, %4, %cst {dimension_numbers = #tpu.dot_dimension_numbers<[1], [0], [0], [1], [0, 0, 1, 1], [], []>} : vector<8x128xbf16>, vector<128x128xbf16>, vector<8x128xf32> -> vector<8x128xf32>
    %c0_4 = arith.constant 0 : index
    %c0_5 = arith.constant 0 : index
    %6 = vector.load %arg7[%c0_4, %c0_5] : memref<1x128xf32, #tpu.memory_space<vmem>>, vector<1x128xf32>
    %7 = vector.broadcast %6 : vector<1x128xf32> to vector<8x128xf32>
    %8 = arith.addf %5, %7 : vector<8x128xf32>
    %c0_6 = arith.constant 0 : index
    %c0_7 = arith.constant 0 : index
    %9 = vector.load %arg8[%c0_6, %c0_7] : memref<8x128xf32, #tpu.memory_space<vmem>>, vector<8x128xf32>
    tpu.vector_store %arg8[%c0_6, %c0_7], %8 {strides = array<i32>} : memref<8x128xf32, #tpu.memory_space<vmem>>, vector<8x128xf32>,
    return
  }
  func.func @transform_0(%arg0: i32, %arg1: i32) -> (i32, i32) {
    %c0_i32 = arith.constant 0 : i32
    %c0_i32_0 = arith.constant 0 : i32
    return %arg0, %c0_i32 : i32, i32
  }
  func.func @transform_1(%arg0: i32, %arg1: i32) -> (i32, i32) {
    %c0_i32 = arith.constant 0 : i32
    %c0_i32_0 = arith.constant 0 : i32
    %c0_i32_1 = arith.constant 0 : i32
    return %c0_i32, %c0_i32_0 : i32, i32
  }
  func.func @transform_2(%arg0: i32, %arg1: i32) -> (i32, i32) {
    %c0_i32 = arith.constant 0 : i32
    %c0_i32_0 = arith.constant 0 : i32
    %c0_i32_1 = arith.constant 0 : i32
    return %c0_i32, %c0_i32_0 : i32, i32
  }
  func.func @transform_3(%arg0: i32, %arg1: i32) -> (i32, i32) {
    %c0_i32 = arith.constant 0 : i32
    %c0_i32_0 = arith.constant 0 : i32
    %c0_i32_1 = arith.constant 0 : i32
    return %c0_i32, %c0_i32_0 : i32, i32
  }
  func.func @transform_4(%arg0: i32, %arg1: i32) -> (i32, i32) {
    %c0_i32 = arith.constant 0 : i32
    %c0_i32_0 = arith.constant 0 : i32
    return %c0_i32, %arg1 : i32, i32
  }
  func.func @transform_5(%arg0: i32, %arg1: i32) -> (i32, i32) {
    %c0_i32 = arith.constant 0 : i32
    %c0_i32_0 = arith.constant 0 : i32
    return %c0_i32, %arg1 : i32, i32
  }
  func.func @transform_6(%arg0: i32, %arg1: i32) -> (i32, i32) {
    %c0_i32 = arith.constant 0 : i32
    return %arg0, %arg1 : i32, i32
  }
}

</mosaic_0001>

<llo_original>
// kernel: _timestep_embedding_forward.1
$region0: #{_timestep_embedding_forward.1}
  #allocation0 [shape = 'u32[]', space=smem, size = 0x4, offset = 0x4, fixed_abs, tag = 'smem constant byte address 0x4 - core index']
  #allocation1 [shape = 'u32[144,128]{1,0:T(1,128)}', space=vmem, size = 0x12000, scoped, tag = 'internal scratch']
  #allocation2 [shape = 'bf16[8,128]{1,0:T(8,128)(2,1)}', space=vmem, size = 0x800, scoped, tag = 'scratch operand']
  %s0 = inlined_call_operand.vmem [shape: f32[8,1], index: 0, kind: input, shape index: {}]
  %s1 = inlined_call_operand.vmem [shape: f32[2,128], index: 1, kind: input, shape index: {}]
  %s2 = inlined_call_operand.hbm [shape: bf16[128,128], index: 2, kind: input, shape index: {}]
  %s3 = inlined_call_operand.vmem [shape: f32[1,128], index: 3, kind: input, shape index: {}]
  %s4 = inlined_call_operand.hbm [shape: bf16[128,128], index: 4, kind: input, shape index: {}]
  %s5 = inlined_call_operand.vmem [shape: f32[1,128], index: 5, kind: input, shape index: {}]
  %s6 = inlined_call_operand.hbm [shape: f32[8,128], index: 6, kind: output, shape index: {}]
  %s7 = sld [smem:[#allocation0]]
  $region46: #{_timestep_embedding_forward.1} parent=0
    _
  %s9 = ssub.s32 1, %s7
  %s10 = scalar_select 0, %s9, %s7
  $region1: #{_timestep_embedding_forward.1} parent=0
    #allocation3 [shape = 'u8[32768]{0}', space=vmem, size = 0x8000, scoped, tag = 'input window, operand 2, single buffered']
    #allocation4 [shape = 's32[1]{0}', space=sflag, size = 0x4, scoped, tag = 'scoped memory for _timestep_embedding_forward.1']
    #allocation5 [shape = 's32[1]{0}', space=sflag, size = 0x4, scoped, tag = 'scoped memory for _timestep_embedding_forward.1']
    #allocation6 [shape = 'u8[32768]{0}', space=vmem, size = 0x8000, scoped, tag = 'input window, operand 4, single buffered']
    #allocation7 [shape = 's32[1]{0}', space=sflag, size = 0x4, scoped, tag = 'scoped memory for _timestep_embedding_forward.1']
    #allocation8 [shape = 'u8[4096]{0}', space=vmem, size = 0x1000, scoped, tag = 'output window, operand 0, single buffered']
    %11 = vsyncpa [#allocation4], 0
    %12 = vsyncpa [#allocation7], 0
    %13 = vsyncpa [#allocation5], 0
    // Predicated region
    $region2: #{_timestep_embedding_forward.1} parent=1 // pred_check
      _
    $region3: #{_timestep_embedding_forward.1} parent=1 // pred_check_branch
      %15 = sbr.rel (0) target = $region5
    $region4: #{_timestep_embedding_forward.1} parent=1 // pred_region
      _
    $region5: #{_timestep_embedding_forward.1} parent=1 // pred_fallthru
      _
    // Predicated region
    $region6: #{_timestep_embedding_forward.1} parent=1 // pred_check
      _
    $region7: #{_timestep_embedding_forward.1} parent=1 // pred_check_branch
      %17 = sbr.rel (0) target = $region9
    $region8: #{_timestep_embedding_forward.1} parent=1 // pred_region
      _
    $region9: #{_timestep_embedding_forward.1} parent=1 // pred_fallthru
      _
    // Predicated region
    $region10: #{_timestep_embedding_forward.1} parent=1 // pred_check
      _
    $region11: #{_timestep_embedding_forward.1} parent=1 // pred_check_branch
      %19 = sbr.rel (0) target = $region13
    $region12: #{_timestep_embedding_forward.1} parent=1 // pred_region
      %s21 = ssub.s32 1024, 1024
      %22 = vsyncadd [#allocation4], %s21
      %s23 = sshll.u32 [#allocation3], 4
      %s24 = int_to_ptr.vmem [resolvable:$true] %s23
      %29 = dma.hbm_to_vmem [thread:$0]  %s2, 1024, %s24, [#allocation4], 64, 64, 4
    $region13: #{_timestep_embedding_forward.1} parent=1 // pred_fallthru
      _
    // Predicated region
    $region14: #{_timestep_embedding_forward.1} parent=1 // pred_check
      _
    $region15: #{_timestep_embedding_forward.1} parent=1 // pred_check_branch
      %31 = sbr.rel (0) target = $region17
    $region16: #{_timestep_embedding_forward.1} parent=1 // pred_region
      _
    $region17: #{_timestep_embedding_forward.1} parent=1 // pred_fallthru
      _
    // Predicated region
    $region18: #{_timestep_embedding_forward.1} parent=1 // pred_check
      _
    $region19: #{_timestep_embedding_forward.1} parent=1 // pred_check_branch
      %33 = sbr.rel (0) target = $region21
    $region20: #{_timestep_embedding_forward.1} parent=1 // pred_region
      %s35 = ssub.s32 1024, 1024
      %36 = vsyncadd [#allocation7], %s35
      %s37 = sshll.u32 [#allocation6], 4
      %s38 = int_to_ptr.vmem [resolvable:$true] %s37
      %43 = dma.hbm_to_vmem [thread:$0]  %s4, 1024, %s38, [#allocation7], 64, 64, 4
    $region21: #{_timestep_embedding_forward.1} parent=1 // pred_fallthru
      _
    // Predicated region
    $region22: #{_timestep_embedding_forward.1} parent=1 // pred_check
      _
    $region23: #{_timestep_embedding_forward.1} parent=1 // pred_check_branch
      %45 = sbr.rel (0) target = $region25
    $region24: #{_timestep_embedding_forward.1} parent=1 // pred_region
      _
    $region25: #{_timestep_embedding_forward.1} parent=1 // pred_fallthru
      _
    // Predicated region
    $region26: #{_timestep_embedding_forward.1} parent=1 // pred_check
      _
    $region27: #{_timestep_embedding_forward.1} parent=1 // pred_check_branch
      %47 = sbr.rel (0) target = $region29
    $region28: #{_timestep_embedding_forward.1} parent=1 // pred_region
      %48 = dma.done [#allocation4], 1024
    $region29: #{_timestep_embedding_forward.1} parent=1 // pred_fallthru
      _
    // Predicated region
    $region30: #{_timestep_embedding_forward.1} parent=1 // pred_check
      _
    $region31: #{_timestep_embedding_forward.1} parent=1 // pred_check_branch
      %50 = sbr.rel (0) target = $region33
    $region32: #{_timestep_embedding_forward.1} parent=1 // pred_region
      %51 = dma.done [#allocation7], 1024
    $region33: #{_timestep_embedding_forward.1} parent=1 // pred_fallthru
      _
    %p53 = scmp.eq.s32.totalorder 0, 0
    // Predicated region
    $region34: #{_timestep_embedding_forward.1} parent=1 // pred_check
      %p54 = pneg %p53
    $region35: #{_timestep_embedding_forward.1} parent=1 // pred_check_branch
      %56 = sbr.rel (%p54) target = $region37
    $region36: #{_timestep_embedding_forward.1} parent=1 // pred_region
      %v57 = vld [vmem:[%s0] sm:$0xff]
      %v58 = vld [vmem:[%s1] sm:$0x1]
      %v59 = vld [vmem:[%s1 + $0x1] sm:$0x1]
      %61 = vset.pattern.permute.xlu0 0
      %62 = vperm.xlu0 %61, %v57
      %v63 = vpop.permute.xlu0 %62
      %v65 = vlaneseq
      %v66 = vshrl.u32 %v65, 7
      %v67 = vsub.s32 0, %v66
      %v68 = vrot.slane %v58, %v67
      %v69 = vmul.f32 %v63, %v68
      %v70 = vlaneseq
      %v71 = vshrl.u32 %v70, 7
      %v72 = vsub.s32 0, %v71
      %v73 = vrot.slane %v59, %v72
      %v74 = vadd.f32 %v69, %v73
      %v75 = vand.u32 2147483647, %v74
      %vm76 = vcmp.le.f32.partialorder %v75, 0.7853982
      %vm77 = vcmp.lt.s32.totalorder %v74, 0
      %v78 = vand.u32 %v74, 2139095040
      %v79 = vshrl.u32 %v78, 23
      %v80 = vsub.s32 %v79, 127
      %v81 = vand.u32 2147483647, %v74
      %v82 = vand.u32 %v81, 8388607
      %v83 = vor.u32 %v82, 8388608
      %v84 = vsub.s32 0, %v83
      %v85 = vadd.s32 %v80, 1
      %vm86 = vcmp.gt.s32.totalorder %v85, 0
      %v87 = vsel %vm86, %v85, 0
      %v88 = vshrl.u32 %v87, 5
      %v89 = vand.u32 %v87, 31
      %v90 = vsub.s32 32, %v89
      %v91 = vshrl.u32 683565275, %v90
      %v92 = vshll.u32 683565275, %v89
      %v93 = vshrl.u32 2475754826, %v90
      %v94 = vor.u32 %v92, %v93
      %v95 = vshll.u32 2475754826, %v89
      %v96 = vshrl.u32 2131351028, %v90
      %v97 = vor.u32 %v95, %v96
      %v98 = vshll.u32 2131351028, %v89
      %v99 = vshrl.u32 2102212464, %v90
      %v100 = vor.u32 %v98, %v99
      %v101 = vshll.u32 2102212464, %v89
      %v102 = vshrl.u32 920167782, %v90
      %v103 = vor.u32 %v101, %v102
      %v104 = vshll.u32 920167782, %v89
      %v105 = vshrl.u32 1326507024, %v90
      %v106 = vor.u32 %v104, %v105
      %vm107 = vcmp.lt.s32.totalorder %v88, 1
      %vm108 = vcmp.lt.s32.totalorder %v88, 2
      %vm109 = vcmp.lt.s32.totalorder %v88, 3
      %vm110 = vcmp.lt.s32.totalorder %v88, 4
      %v111 = vsel %vm107, %v91, %v94
      %v112 = vsel %vm110, %v100, 2102212464
      %v113 = vsel %vm109, %v97, %v112
      %v114 = vsel %vm108, %v111, %v113
      %v115 = vsel %vm107, %v94, %v97
      %v116 = vsel %vm110, %v103, 920167782
      %v117 = vsel %vm109, %v100, %v116
      %v118 = vsel %vm108, %v115, %v117
      %v119 = vsel %vm107, %v97, %v100
      %v120 = vsel %vm110, %v106, 1326507024
      %v121 = vsel %vm109, %v103, %v120
      %v122 = vsel %vm108, %v119, %v121
      %v123 = vshll.u32 %v83, 8
      %v124 = vmul.u32.u64.compose %v123, %v122
      %v125 = vextract.low.u32 %v124
      %v126 = vextract.high.u32 %v124
      %v127 = vmul.u32.u64.compose %v123, %v118
      %v128 = vextract.low.u32 %v127
      %v129 = vextract.high.u32 %v127
      %v130 = vmul.u32 %v123, %v114
      %v131 = vadd.s32 %v126, %v128
      %vm132 = vc.u32 %v126, %v128
      %v133 = vadd.s32 %v129, 1
      %v134 = vsel %vm132, %v133, %v129
      %v135 = vadd.s32 %v130, %v134
      %v136 = vadd.s32 %v135, 536870912
      %v137 = vshrl.u32 %v136, 30
      %v138 = vshll.u32 %v137, 30
      %v139 = vsub.s32 %v135, %v138
      %vm140 = vcmp.lt.s32.totalorder %v139, 0
      %v141 = vsub.s32 0, %v139
      %v142 = vsel %vm140, %v141, %v139
      %v143 = vclz %v142
      %v144 = vsub.s32 %v143, 2
      %vm145 = vcmp.gt.s32.totalorder 0, %v144
      %v146 = vsel %vm145, 0, %v144
      %v147 = vsub.s32 32, %v146
      %v148 = vshll.u32 %v139, %v146
      %v149 = vshrl.u32 %v131, %v147
      %v150 = vor.u32 %v148, %v149
      %v151 = vsub.s32 4294967266, %v146
      %v152 = vadd.s32 %v151, 127
      %v153 = vshll.u32 %v152, 23
      %v154 = vor.u32 4788187, %v153
      %v155 = vand.u32 2147483647, %v154
      %v157 = vcvt.s32.f32 %v150
      %v158 = vmul.f32 %v157, %v155
      %v159 = vxor.u32 %v158, 2147483648
      %v160 = vsel %vm77, %v159, %v158
      %v161 = vsub.s32 4, %v137
      %v162 = vsel %vm77, %v161, %v137
      %v163 = vsel %vm76, %v74, %v160
      %v164 = vsel %vm76, 0, %v162
      %v165 = vcosq.f32.pop %v163
      %v166 = vsinq.f32.pop %v163
      %vm167 = vweird.f32 %v74
      %v168 = vadd.s32 %v164, 3
      %v169 = vand.u32 %v168, 3
      %vm170 = vcmp.lt.s32.totalorder %v169, 2
      %vm171 = vcmp.eq.s32.totalorder %v169, 0
      %v172 = vxor.u32 %v166, 2147483648
      %v173 = vsel %vm171, %v165, %v172
      %vm174 = vcmp.eq.s32.totalorder %v169, 2
      %v175 = vxor.u32 %v165, 2147483648
      %v176 = vsel %vm174, %v175, %v166
      %v177 = vsel %vm170, %v173, %v176
      %v178 = vsel %vm167, nan, %v177
      %v179 = vpack.c.bf16 %v178, %v178
      %v180 = vld [vmem:[#allocation3] sm:$0xf]
      %v181 = vld [vmem:[#allocation3 + $0x4] sm:$0xf]
      %v182 = vld [vmem:[#allocation3 + $0x8] sm:$0xf]
      %v183 = vld [vmem:[#allocation3 + $0xc] sm:$0xf]
      %v184 = vld [vmem:[#allocation3 + $0x10] sm:$0xf]
      %v185 = vld [vmem:[#allocation3 + $0x14] sm:$0xf]
      %v186 = vld [vmem:[#allocation3 + $0x18] sm:$0xf]
      %v187 = vld [vmem:[#allocation3 + $0x1c] sm:$0xf]
      %v188 = vld [vmem:[#allocation3 + $0x20] sm:$0xf]
      %v189 = vld [vmem:[#allocation3 + $0x24] sm:$0xf]
      %v190 = vld [vmem:[#allocation3 + $0x28] sm:$0xf]
      %v191 = vld [vmem:[#allocation3 + $0x2c] sm:$0xf]
      %v192 = vld [vmem:[#allocation3 + $0x30] sm:$0xf]
      %v193 = vld [vmem:[#allocation3 + $0x34] sm:$0xf]
      %v194 = vld [vmem:[#allocation3 + $0x38] sm:$0xf]
      %v195 = vld [vmem:[#allocation3 + $0x3c] sm:$0xf]
      %v196 = vld [vmem:[%s3] sm:$0x1]
      %v198 = vlaneseq
      %v199 = vshrl.u32 %v198, 7
      %v200 = vsub.s32 0, %v199
      %v201 = vrot.slane %v196, %v200
      %v219 = vunpack.c.l.b16 %v180
      %v220 = vunpack.c.l.b16 %v181
      %v221 = vunpack.c.l.b16 %v182
      %v222 = vunpack.c.l.b16 %v183
      %v223 = vunpack.c.l.b16 %v184
      %v224 = vunpack.c.l.b16 %v185
      %v225 = vunpack.c.l.b16 %v186
      %v226 = vunpack.c.l.b16 %v187
      %v227 = vunpack.c.l.b16 %v188
      %v228 = vunpack.c.l.b16 %v189
      %v229 = vunpack.c.l.b16 %v190
      %v230 = vunpack.c.l.b16 %v191
      %v231 = vunpack.c.l.b16 %v192
      %v232 = vunpack.c.l.b16 %v193
      %v233 = vunpack.c.l.b16 %v194
      %v234 = vunpack.c.l.b16 %v195
      %v235 = vpack.c.b16 %v220, %v219
      %v236 = vpack.c.b16 %v222, %v221
      %v237 = vpack.c.b16 %v224, %v223
      %v238 = vpack.c.b16 %v226, %v225
      %v239 = vpack.c.b16 %v228, %v227
      %v240 = vpack.c.b16 %v230, %v229
      %v241 = vpack.c.b16 %v232, %v231
      %v242 = vpack.c.b16 %v234, %v233
      %251 = vmatprep.subr.bf16.mxu0 0
      %252 = vmatpush1.bf16.msra.mxu0 %v235
      %253 = vmatprep.subr.bf16.mxu0 0
      %254 = vmatpush1.bf16.msra.mxu0 %v236
      %255 = vmatprep.subr.bf16.mxu0 0
      %256 = vmatpush1.bf16.msra.mxu0 %v237
      %257 = vmatprep.subr.bf16.mxu0 0
      %258 = vmatpush1.bf16.msra.mxu0 %v238
      %259 = vmatprep.subr.bf16.mxu0 0
      %260 = vmatpush1.bf16.msra.mxu0 %v239
      %261 = vmatprep.subr.bf16.mxu0 0
      %262 = vmatpush1.bf16.msra.mxu0 %v240
      %263 = vmatprep.subr.bf16.mxu0 0
      %264 = vmatpush1.bf16.msra.mxu0 %v241
      %265 = vmatprep.subr.bf16.mxu0 0
      %266 = vmatpush1.bf16.msra.mxu0 %v242
      %267 = vmatprep.subr.bf16.mxu0 0
      %268 = vmatpush1.bf16.msra.mxu0 0
      %269 = vmatprep.subr.bf16.mxu0 0
      %270 = vmatpush1.bf16.msra.mxu0 0
      %271 = vmatprep.subr.bf16.mxu0 0
      %272 = vmatpush1.bf16.msra.mxu0 0
      %273 = vmatprep.subr.bf16.mxu0 0
      %274 = vmatpush1.bf16.msra.mxu0 0
      %275 = vmatprep.subr.bf16.mxu0 0
      %276 = vmatpush1.bf16.msra.mxu0 0
      %277 = vmatprep.subr.bf16.mxu0 0
      %278 = vmatpush1.bf16.msra.mxu0 0
      %279 = vmatprep.subr.bf16.mxu0 0
      %280 = vmatpush1.bf16.msra.mxu0 0
      %281 = vmatprep.subr.bf16.mxu0 0
      %282 = vmatpush1.bf16.msra.mxu0 0
      %283 = vmatprep.mubr.bf16.mxu0 0
      %284 = vmatmul.mubr.bf16.gmra.mrb[0].mxu0 %v179
      %v285 = vpop.f32.mrb[0].mxu0
      %v286 = vadd.f32 %v201, %v285
      %v287 = vpop.f32.mrb[0].mxu0
      %v288 = vpop.f32.mrb[0].mxu0
      %v289 = vpop.f32.mrb[0].mxu0
      %290 = vdwg.mxu0
      %v291 = vmul.f32 %v286, 0.5
      %v292 = vtanh.pop %v291
      %v293 = vadd.f32 %v292, 1.0
      %v294 = vmul.f32 %v293, 0.5
      %v295 = vmul.f32 %v286, %v294
      %v296 = vpack.c.bf16 %v295, %v295
      %297 = vst [vmem:[#allocation2] sm:$0xf] %v296
    $region37: #{_timestep_embedding_forward.1} parent=1 // pred_fallthru
      _
    %v298 = vld [vmem:[#allocation2] sm:$0xf]
    %v299 = vld [vmem:[#allocation6] sm:$0xf]
    %v300 = vld [vmem:[#allocation6 + $0x4] sm:$0xf]
    %v301 = vld [vmem:[#allocation6 + $0x8] sm:$0xf]
    %v302 = vld [vmem:[#allocation6 + $0xc] sm:$0xf]
    %v303 = vld [vmem:[#allocation6 + $0x10] sm:$0xf]
    %v304 = vld [vmem:[#allocation6 + $0x14] sm:$0xf]
    %v305 = vld [vmem:[#allocation6 + $0x18] sm:$0xf]
    %v306 = vld [vmem:[#allocation6 + $0x1c] sm:$0xf]
    %v307 = vld [vmem:[#allocation6 + $0x20] sm:$0xf]
    %v308 = vld [vmem:[#allocation6 + $0x24] sm:$0xf]
    %v309 = vld [vmem:[#allocation6 + $0x28] sm:$0xf]
    %v310 = vld [vmem:[#allocation6 + $0x2c] sm:$0xf]
    %v311 = vld [vmem:[#allocation6 + $0x30] sm:$0xf]
    %v312 = vld [vmem:[#allocation6 + $0x34] sm:$0xf]
    %v313 = vld [vmem:[#allocation6 + $0x38] sm:$0xf]
    %v314 = vld [vmem:[#allocation6 + $0x3c] sm:$0xf]
    %v315 = vld [vmem:[%s5] sm:$0x1]
    %v317 = vlaneseq
    %v318 = vshrl.u32 %v317, 7
    %v319 = vsub.s32 0, %v318
    %v320 = vrot.slane %v315, %v319
    %v338 = vunpack.c.l.b16 %v299
    %v339 = vunpack.c.l.b16 %v300
    %v340 = vunpack.c.l.b16 %v301
    %v341 = vunpack.c.l.b16 %v302
    %v342 = vunpack.c.l.b16 %v303
    %v343 = vunpack.c.l.b16 %v304
    %v344 = vunpack.c.l.b16 %v305
    %v345 = vunpack.c.l.b16 %v306
    %v346 = vunpack.c.l.b16 %v307
    %v347 = vunpack.c.l.b16 %v308
    %v348 = vunpack.c.l.b16 %v309
    %v349 = vunpack.c.l.b16 %v310
    %v350 = vunpack.c.l.b16 %v311
    %v351 = vunpack.c.l.b16 %v312
    %v352 = vunpack.c.l.b16 %v313
    %v353 = vunpack.c.l.b16 %v314
    %v354 = vpack.c.b16 %v339, %v338
    %v355 = vpack.c.b16 %v341, %v340
    %v356 = vpack.c.b16 %v343, %v342
    %v357 = vpack.c.b16 %v345, %v344
    %v358 = vpack.c.b16 %v347, %v346
    %v359 = vpack.c.b16 %v349, %v348
    %v360 = vpack.c.b16 %v351, %v350
    %v361 = vpack.c.b16 %v353, %v352
    %370 = vmatprep.subr.bf16.mxu0 0
    %371 = vmatpush1.bf16.msra.mxu0 %v354
    %372 = vmatprep.subr.bf16.mxu0 0
    %373 = vmatpush1.bf16.msra.mxu0 %v355
    %374 = vmatprep.subr.bf16.mxu0 0
    %375 = vmatpush1.bf16.msra.mxu0 %v356
    %376 = vmatprep.subr.bf16.mxu0 0
    %377 = vmatpush1.bf16.msra.mxu0 %v357
    %378 = vmatprep.subr.bf16.mxu0 0
    %379 = vmatpush1.bf16.msra.mxu0 %v358
    %380 = vmatprep.subr.bf16.mxu0 0
    %381 = vmatpush1.bf16.msra.mxu0 %v359
    %382 = vmatprep.subr.bf16.mxu0 0
    %383 = vmatpush1.bf16.msra.mxu0 %v360
    %384 = vmatprep.subr.bf16.mxu0 0
    %385 = vmatpush1.bf16.msra.mxu0 %v361
    %386 = vmatprep.subr.bf16.mxu0 0
    %387 = vmatpush1.bf16.msra.mxu0 0
    %388 = vmatprep.subr.bf16.mxu0 0
    %389 = vmatpush1.bf16.msra.mxu0 0
    %390 = vmatprep.subr.bf16.mxu0 0
    %391 = vmatpush1.bf16.msra.mxu0 0
    %392 = vmatprep.subr.bf16.mxu0 0
    %393 = vmatpush1.bf16.msra.mxu0 0
    %394 = vmatprep.subr.bf16.mxu0 0
    %395 = vmatpush1.bf16.msra.mxu0 0
    %396 = vmatprep.subr.bf16.mxu0 0
    %397 = vmatpush1.bf16.msra.mxu0 0
    %398 = vmatprep.subr.bf16.mxu0 0
    %399 = vmatpush1.bf16.msra.mxu0 0
    %400 = vmatprep.subr.bf16.mxu0 0
    %401 = vmatpush1.bf16.msra.mxu0 0
    %402 = vmatprep.mubr.bf16.mxu0 0
    %403 = vmatmul.mubr.bf16.gmra.mrb[0].mxu0 %v298
    %v404 = vpop.f32.mrb[0].mxu0
    %v405 = vadd.f32 %v320, %v404
    %v406 = vpop.f32.mrb[0].mxu0
    %v407 = vpop.f32.mrb[0].mxu0
    %v408 = vpop.f32.mrb[0].mxu0
    %409 = vdwg.mxu0
    %410 = vst [vmem:[#allocation8] sm:$0xff] %v405
    // Predicated region
    $region38: #{_timestep_embedding_forward.1} parent=1 // pred_check
      _
    $region39: #{_timestep_embedding_forward.1} parent=1 // pred_check_branch
      %412 = sbr.rel (0) target = $region41
    $region40: #{_timestep_embedding_forward.1} parent=1 // pred_region
      %s414 = ssub.s32 128, 128
      %415 = vsyncadd [#allocation5], %s414
      %s417 = sshll.u32 [#allocation8], 4
      %s418 = int_to_ptr.vmem [resolvable:$true] %s417
      %420 = dma.vmem_to_hbm [thread:$0]  %s418, 128, %s6, [#allocation5]
    $region41: #{_timestep_embedding_forward.1} parent=1 // pred_fallthru
      _
    // Predicated region
    $region42: #{_timestep_embedding_forward.1} parent=1 // pred_check
      _
    $region43: #{_timestep_embedding_forward.1} parent=1 // pred_check_branch
      %422 = sbr.rel (0) target = $region45
    $region44: #{_timestep_embedding_forward.1} parent=1 // pred_region
      %423 = dma.done [#allocation5], 128
    $region45: #{_timestep_embedding_forward.1} parent=1 // pred_fallthru
      _
    %424 = vsyncpa [#allocation4], 1
    %425 = vsyncpa [#allocation7], 1
    %426 = vsyncpa [#allocation5], 1

</llo_original>
